<compile_context>
chip_gen: v6e
topology: v6e:2x2x1
jax: 0.10.0
libtpu: 0.0.40
codegen_flags: <defaults>
</compile_context>

<pallas_src>
import functools

import jax
import jax.numpy as jnp
from jax.experimental import pallas as pl
from jax.experimental.pallas import tpu as pltpu

LANES = 128
SUBLANES = 8
TB_MAX = 512          # large-batch row tile (review: 512-1024)
NEG_BIG = -1e9        # padded-logit bias; exp(NEG_BIG - m) underflows to 0.
IGNORE_INDEX = -100   # PyTorch CrossEntropyLoss default ignore_index


def _round_up(x, m):
    return (x + m - 1) // m * m


# ---------------------------------------------------------------------------
# Pallas kernel: fc1 + ReLU + fc2 + per-row cross-entropy (folded into output)
# ---------------------------------------------------------------------------
def _mlp_head_kernel(cls_ref, w1_ref, b1_ref, w2_ref, b2_ref, labels_ref,
                     out_ref):
    # cls_ref:    (TB, H)   f32  (cast to bf16 in-kernel for the MXU)
    # w1_ref:     (H, F1)   bf16    b1_ref: (1, F1) f32
    # w2_ref:     (F1, Lp)  bf16    b2_ref: (1, Lp) f32 (pad cols = NEG_BIG)
    # labels_ref: (TB, 1)   int32
    # out_ref:    (TB, Lp)  f32 -- cols [0, L) are logits, col Lp-1 holds the
    #             per-row CE loss (the wrapper guarantees Lp >= L + 1).
    #
    # TODO(synk): nn.Dropout(0.3) is identity in eval mode; the training-mode
    # RNG mask of the PyTorch module is not reproduced.
    x = cls_ref[...].astype(jnp.bfloat16)         # in-kernel cast (VPU, hidden)

    # fc1 + ReLU  (bf16 MXU matmul, f32 accumulate)
    h = jnp.dot(x, w1_ref[...], preferred_element_type=jnp.float32) + b1_ref[...]
    h = jnp.maximum(h, 0.0)

    # fc2; padded bias keeps pad columns at NEG_BIG so they vanish in the LSE.
    logits = jnp.dot(h.astype(jnp.bfloat16), w2_ref[...],
                     preferred_element_type=jnp.float32) + b2_ref[...]

    # Numerically stable per-row cross-entropy: lse(logits) - logits[label].
    m = jnp.max(logits, axis=-1, keepdims=True)
    lse = m + jnp.log(jnp.sum(jnp.exp(logits - m), axis=-1, keepdims=True))
    col = jax.lax.broadcasted_iota(jnp.int32, logits.shape, 1)
    picked = jnp.sum(jnp.where(col == labels_ref[...], logits, 0.0),
                     axis=-1, keepdims=True)
    rowloss = lse - picked                         # (TB, 1); lse if label==-100

    # Fold the per-row loss into the last padded column -> one lane-dense vst.
    lp = logits.shape[-1]
    out_ref[...] = jnp.where(col == (lp - 1), rowloss, logits)


# ---------------------------------------------------------------------------
# One-time weight preparation (hoisted out of the per-call wrapper).
# ---------------------------------------------------------------------------
def prepare_head_params(w1, b1, w2, b2):
    H, F1 = w1.shape
    L = w2.shape[1]
    # At least one spare padded column to carry the folded per-row loss.
    Lp = _round_up(L + 1, LANES)
    w2p = jnp.zeros((F1, Lp), jnp.bfloat16).at[:, :L].set(w2.astype(jnp.bfloat16))
    b2p = jnp.full((1, Lp), NEG_BIG, jnp.float32).at[0, :L].set(
        b2.reshape(-1).astype(jnp.float32))
    return {
        "w1": w1.astype(jnp.bfloat16),             # (H, F1)  bf16
        "b1": b1.reshape(1, F1).astype(jnp.float32),
        "w2": w2p,                                 # (F1, Lp) bf16
        "b2": b2p,                                 # (1, Lp)  f32
    }


# ---------------------------------------------------------------------------
# Jitted wrapper: tiling / grid setup / loss reduction.
# ---------------------------------------------------------------------------
@functools.partial(jax.jit, static_argnames=("num_labels",))
def roberta_mlp_head(cls_output, w1b, b1f, w2p, b2p, labels, *, num_labels):
    B, H = cls_output.shape
    F1 = w1b.shape[1]
    Lp = w2p.shape[1]
    L = num_labels

    # Batch tiling: large tiles for large B (amortize per-step overhead);
    # otherwise split into >=2 sublane-aligned tiles so both v7x TensorCores
    # get work on the "parallel" grid axis.
    if B >= 2 * TB_MAX:
        TB = TB_MAX
    else:
        TB = max(SUBLANES, _round_up(pl.cdiv(B, 2), SUBLANES))
    Bp = _round_up(B, TB)
    grid = (Bp // TB,)

    labels_2d = labels.astype(jnp.int32).reshape(B, 1)
    if Bp != B:   # pad rows only when strictly needed
        cls_in = jnp.pad(cls_output.astype(jnp.float32), ((0, Bp - B), (0, 0)))
        labels_in = jnp.pad(labels_2d, ((0, Bp - B), (0, 0)))
    else:
        cls_in = cls_output.astype(jnp.float32)
        labels_in = labels_2d

    cost = pl.CostEstimate(
        flops=2 * Bp * (H * F1 + F1 * Lp),
        transcendentals=Bp * (Lp + 1),
        bytes_accessed=(cls_in.size * 4 + w1b.size * 2 + w2p.size * 2
                        + b1f.size * 4 + b2p.size * 4 + labels_in.size * 4
                        + Bp * Lp * 4),
    )

    out_p = pl.pallas_call(
        _mlp_head_kernel,
        out_shape=jax.ShapeDtypeStruct((Bp, Lp), jnp.float32),
        grid_spec=pltpu.PrefetchScalarGridSpec(
            num_scalar_prefetch=0,
            grid=grid,
            in_specs=[
                pl.BlockSpec((TB, H), lambda i: (i, 0)),      # cls (tiled, f32)
                pl.BlockSpec((H, F1), lambda i: (0, 0)),      # w1 (VMEM-resident)
                pl.BlockSpec((1, F1), lambda i: (0, 0)),      # b1 (resident)
                pl.BlockSpec((F1, Lp), lambda i: (0, 0)),     # w2 (resident)
                pl.BlockSpec((1, Lp), lambda i: (0, 0)),      # b2 (resident)
                pl.BlockSpec((TB, 1), lambda i: (i, 0)),      # labels (tiled)
            ],
            out_specs=pl.BlockSpec((TB, Lp), lambda i: (i, 0)),
        ),
        compiler_params=pltpu.CompilerParams(
            dimension_semantics=("parallel",)),
        cost_estimate=cost,
    )(cls_in, w1b, b1f, w2p, b2p, labels_in)

    logits = out_p[:B, :L]
    row_loss = out_p[:B, Lp - 1]

    # nn.CrossEntropyLoss(mean) with ignore_index=-100 semantics.
    valid = (labels.astype(jnp.int32) != IGNORE_INDEX).astype(jnp.float32)
    denom = jnp.maximum(jnp.sum(valid), 1.0)
    loss = jnp.sum(row_loss * valid) / denom
    return {"loss": loss, "logits": logits}


# ---------------------------------------------------------------------------
# Deterministic synthetic stand-in for the RoBERTa backbone (plain JAX glue).
# ---------------------------------------------------------------------------
def synthetic_roberta_backbone(params, input_ids, attention_mask):
    emb = params["embedding"][input_ids]                        # (B, S, H)
    return jnp.tanh(emb) * attention_mask[..., None].astype(jnp.float32)


def init_params(key, vocab_size, hidden_size, num_labels):
    k_emb, k_w1, k_b1, k_w2, k_b2 = jax.random.split(key, 5)
    return {
        "embedding": jax.random.normal(k_emb, (vocab_size, hidden_size),
                                       jnp.float32) * 0.02,
        "w1": jax.random.normal(k_w1, (hidden_size, 512), jnp.float32) * 0.02,
        "b1": jax.random.normal(k_b1, (1, 512), jnp.float32) * 0.02,
        "w2": jax.random.normal(k_w2, (512, num_labels), jnp.float32) * 0.02,
        "b2": jax.random.normal(k_b2, (1, num_labels), jnp.float32) * 0.02,
    }


def roberta_mlp_forward(params, head_params, input_ids, attention_mask,
                        labels=None, *, num_labels):
    last_hidden_state = synthetic_roberta_backbone(params, input_ids,
                                                   attention_mask)
    cls_output = last_hidden_state[:, 0, :]                     # (B, H)
    if labels is None:
        dummy = jnp.zeros((cls_output.shape[0],), jnp.int32)
        out = roberta_mlp_head(cls_output, head_params["w1"], head_params["b1"],
                               head_params["w2"], head_params["b2"], dummy,
                               num_labels=num_labels)
        return {"logits": out["logits"]}
    return roberta_mlp_head(cls_output, head_params["w1"], head_params["b1"],
                            head_params["w2"], head_params["b2"], labels,
                            num_labels=num_labels)


if __name__ == "__main__":
    # Small shapes consistent with the module's forward.
    B, S, H, V, NUM_LABELS = 4, 8, 256, 50, 8

    key = jax.random.PRNGKey(0)
    k_params, k_ids, k_lbl = jax.random.split(key, 3)

    params = init_params(k_params, V, H, NUM_LABELS)
    head_params = jax.block_until_ready(
        prepare_head_params(params["w1"], params["b1"],
                            params["w2"], params["b2"]))   # one-time prep

    input_ids = jax.random.randint(k_ids, (B, S), 0, V, dtype=jnp.int32)
    attention_mask = jnp.ones((B, S), dtype=jnp.int32)
    labels = jax.random.randint(k_lbl, (B,), 0, NUM_LABELS, dtype=jnp.int32)

    out = roberta_mlp_forward(params, head_params, input_ids, attention_mask,
                              labels, num_labels=NUM_LABELS)
    jax.block_until_ready(out)

    assert out["logits"].shape == (B, NUM_LABELS)
    assert out["loss"].shape == ()
    assert bool(jnp.isfinite(out["loss"]))
    assert bool(jnp.all(jnp.isfinite(out["logits"])))
    print("KERNEL_OK")
</pallas_src>

<mosaic_0001>
module attributes {stable_mosaic.version = 11 : i64} {
  func.func @_mlp_head_kernel(%arg0: i32, %arg1: memref<8x256xf32, #tpu.memory_space<vmem>>, %arg2: memref<256x512xbf16, #tpu.memory_space<vmem>>, %arg3: memref<1x512xf32, #tpu.memory_space<vmem>>, %arg4: memref<512x128xbf16, #tpu.memory_space<vmem>>, %arg5: memref<1x128xf32, #tpu.memory_space<vmem>>, %arg6: memref<8x1xi32, #tpu.memory_space<vmem>>, %arg7: memref<8x128xf32, #tpu.memory_space<vmem>>) attributes {dimension_semantics = [#tpu.dimension_semantics<parallel>], iteration_bounds = array<i64: 1>, scalar_prefetch = 0 : i64, scratch_operands = 0 : i64, tpu.core_type = #tpu.core_type<tc>, window_params = [{transform_indices = @transform_0, window_bounds = array<i64: 8, 256>}, {pipeline_mode = #tpu.pipeline_mode<synchronous>, transform_indices = @transform_1, window_bounds = array<i64: 256, 512>}, {pipeline_mode = #tpu.pipeline_mode<synchronous>, transform_indices = @transform_2, window_bounds = array<i64: 1, 512>}, {pipeline_mode = #tpu.pipeline_mode<synchronous>, transform_indices = @transform_3, window_bounds = array<i64: 512, 128>}, {pipeline_mode = #tpu.pipeline_mode<synchronous>, transform_indices = @transform_4, window_bounds = array<i64: 1, 128>}, {transform_indices = @transform_5, window_bounds = array<i64: 8, 1>}, {transform_indices = @transform_6, window_bounds = array<i64: 8, 128>}]} {
    %c0 = arith.constant 0 : index
    %c0_0 = arith.constant 0 : index
    %0 = vector.load %arg1[%c0, %c0_0] : memref<8x256xf32, #tpu.memory_space<vmem>>, vector<8x256xf32>
    %1 = arith.truncf %0 : vector<8x256xf32> to vector<8x256xbf16>
    %c0_1 = arith.constant 0 : index
    %c0_2 = arith.constant 0 : index
    %2 = vector.load %arg2[%c0_1, %c0_2] : memref<256x512xbf16, #tpu.memory_space<vmem>>, vector<256x512xbf16>
    %cst = arith.constant dense<0.000000e+00> : vector<8x512xf32>
    %3 = tpu.matmul %1, %2, %cst {dimension_numbers = #tpu.dot_dimension_numbers<[1], [0], [0], [1], [0, 0, 1, 1], [], []>} : vector<8x256xbf16>, vector<256x512xbf16>, vector<8x512xf32> -> vector<8x512xf32>
    %c0_3 = arith.constant 0 : index
    %c0_4 = arith.constant 0 : index
    %4 = vector.load %arg3[%c0_3, %c0_4] : memref<1x512xf32, #tpu.memory_space<vmem>>, vector<1x512xf32>
    %5 = vector.broadcast %4 : vector<1x512xf32> to vector<8x512xf32>
    %6 = arith.addf %3, %5 : vector<8x512xf32>
    %cst_5 = arith.constant 0.000000e+00 : f32
    %7 = vector.broadcast %cst_5 : f32 to vector<8x512xf32>
    %8 = arith.maximumf %6, %7 : vector<8x512xf32>
    %9 = arith.truncf %8 : vector<8x512xf32> to vector<8x512xbf16>
    %c0_6 = arith.constant 0 : index
    %c0_7 = arith.constant 0 : index
    %10 = vector.load %arg4[%c0_6, %c0_7] : memref<512x128xbf16, #tpu.memory_space<vmem>>, vector<512x128xbf16>
    %cst_8 = arith.constant dense<0.000000e+00> : vector<8x128xf32>
    %11 = tpu.matmul %9, %10, %cst_8 {dimension_numbers = #tpu.dot_dimension_numbers<[1], [0], [0], [1], [0, 0, 1, 1], [], []>} : vector<8x512xbf16>, vector<512x128xbf16>, vector<8x128xf32> -> vector<8x128xf32>
    %c0_9 = arith.constant 0 : index
    %c0_10 = arith.constant 0 : index
    %12 = vector.load %arg5[%c0_9, %c0_10] : memref<1x128xf32, #tpu.memory_space<vmem>>, vector<1x128xf32>
    %13 = vector.broadcast %12 : vector<1x128xf32> to vector<8x128xf32>
    %14 = arith.addf %11, %13 : vector<8x128xf32>
    %cst_11 = arith.constant dense<0xFF800000> : vector<8xf32>
    %15 = vector.multi_reduction <maximumf>, %14, %cst_11 [1] : vector<8x128xf32> to vector<8xf32>
    %16 = vector.shape_cast %15 : vector<8xf32> to vector<8x1xf32>
    %17 = vector.broadcast %16 : vector<8x1xf32> to vector<8x128xf32>
    %18 = arith.subf %14, %17 : vector<8x128xf32>
    %19 = math.exp %18 : vector<8x128xf32>
    %cst_12 = arith.constant dense<0.000000e+00> : vector<8xf32>
    %20 = vector.multi_reduction <add>, %19, %cst_12 [1] : vector<8x128xf32> to vector<8xf32>
    %21 = vector.shape_cast %20 : vector<8xf32> to vector<8x1xf32>
    %22 = math.log %21 : vector<8x1xf32>
    %23 = arith.addf %16, %22 : vector<8x1xf32>
    %24 = tpu.iota {dimensions = array<i32: 1>} : vector<8x128xi32>
    %c0_13 = arith.constant 0 : index
    %c0_14 = arith.constant 0 : index
    %25 = vector.load %arg6[%c0_13, %c0_14] : memref<8x1xi32, #tpu.memory_space<vmem>>, vector<8x1xi32>
    %26 = vector.broadcast %25 : vector<8x1xi32> to vector<8x128xi32>
    %27 = arith.cmpi eq, %24, %26 : vector<8x128xi32>
    %cst_15 = arith.constant 0.000000e+00 : f32
    %28 = vector.broadcast %cst_15 : f32 to vector<8x128xf32>
    %29 = arith.select %27, %14, %28 : vector<8x128xi1>, vector<8x128xf32>
    %cst_16 = arith.constant dense<0.000000e+00> : vector<8xf32>
    %30 = vector.multi_reduction <add>, %29, %cst_16 [1] : vector<8x128xf32> to vector<8xf32>
    %31 = vector.shape_cast %30 : vector<8xf32> to vector<8x1xf32>
    %32 = arith.subf %23, %31 : vector<8x1xf32>
    %c127_i32 = arith.constant 127 : i32
    %33 = vector.broadcast %c127_i32 : i32 to vector<8x128xi32>
    %34 = arith.cmpi eq, %24, %33 : vector<8x128xi32>
    %35 = vector.shape_cast %32 : vector<8x1xf32> to vector<8x1xf32>
    %36 = vector.broadcast %35 : vector<8x1xf32> to vector<8x128xf32>
    %37 = arith.select %34, %36, %14 : vector<8x128xi1>, vector<8x128xf32>
    %c0_17 = arith.constant 0 : index
    %c0_18 = arith.constant 0 : index
    %38 = vector.load %arg7[%c0_17, %c0_18] : memref<8x128xf32, #tpu.memory_space<vmem>>, vector<8x128xf32>
    tpu.vector_store %arg7[%c0_17, %c0_18], %37 {strides = array<i32>} : memref<8x128xf32, #tpu.memory_space<vmem>>, vector<8x128xf32>,
    return
  }
  func.func @transform_0(%arg0: i32) -> (i32, i32) {
    %c0_i32 = arith.constant 0 : i32
    %c0_i32_0 = arith.constant 0 : i32
    return %arg0, %c0_i32 : i32, i32
  }
  func.func @transform_1(%arg0: i32) -> (i32, i32) {
    %c0_i32 = arith.constant 0 : i32
    %c0_i32_0 = arith.constant 0 : i32
    %c0_i32_1 = arith.constant 0 : i32
    return %c0_i32, %c0_i32_0 : i32, i32
  }
  func.func @transform_2(%arg0: i32) -> (i32, i32) {
    %c0_i32 = arith.constant 0 : i32
    %c0_i32_0 = arith.constant 0 : i32
    %c0_i32_1 = arith.constant 0 : i32
    return %c0_i32, %c0_i32_0 : i32, i32
  }
  func.func @transform_3(%arg0: i32) -> (i32, i32) {
    %c0_i32 = arith.constant 0 : i32
    %c0_i32_0 = arith.constant 0 : i32
    %c0_i32_1 = arith.constant 0 : i32
    return %c0_i32, %c0_i32_0 : i32, i32
  }
  func.func @transform_4(%arg0: i32) -> (i32, i32) {
    %c0_i32 = arith.constant 0 : i32
    %c0_i32_0 = arith.constant 0 : i32
    %c0_i32_1 = arith.constant 0 : i32
    return %c0_i32, %c0_i32_0 : i32, i32
  }
  func.func @transform_5(%arg0: i32) -> (i32, i32) {
    %c0_i32 = arith.constant 0 : i32
    %c0_i32_0 = arith.constant 0 : i32
    return %arg0, %c0_i32 : i32, i32
  }
  func.func @transform_6(%arg0: i32) -> (i32, i32) {
    %c0_i32 = arith.constant 0 : i32
    %c0_i32_0 = arith.constant 0 : i32
    return %arg0, %c0_i32 : i32, i32
  }
}

</mosaic_0001>

<llo_original>
// kernel: roberta_mlp_head.1
$region0: #{roberta_mlp_head.1}
  #allocation0 [shape = 'u32[]', space=smem, size = 0x4, offset = 0x4, fixed_abs, tag = 'smem constant byte address 0x4 - core index']
  #allocation1 [shape = 'u32[144,128]{1,0:T(1,128)}', space=vmem, size = 0x12000, scoped, tag = 'internal scratch']
  %s0 = inlined_call_operand.vmem [shape: f32[8,256], index: 0, kind: input, shape index: {}]
  %s1 = inlined_call_operand.hbm [shape: bf16[256,512], index: 1, kind: input, shape index: {}]
  %s2 = inlined_call_operand.vmem [shape: f32[1,512], index: 2, kind: input, shape index: {}]
  %s3 = inlined_call_operand.hbm [shape: bf16[512,128], index: 3, kind: input, shape index: {}]
  %s4 = inlined_call_operand.vmem [shape: f32[1,128], index: 4, kind: input, shape index: {}]
  %s5 = inlined_call_operand.vmem [shape: s32[8,1], index: 5, kind: input, shape index: {}]
  %s6 = inlined_call_operand.vmem [shape: f32[8,128], index: 6, kind: output, shape index: {}]
  %s7 = sld [smem:[#allocation0]]
  $region42: #{roberta_mlp_head.1} parent=0
    _
  %s9 = ssub.s32 1, %s7
  %s10 = scalar_select 0, %s9, %s7
  $region1: #{roberta_mlp_head.1} parent=0
    #allocation2 [shape = 'u8[262144]{0}', space=vmem, size = 0x40000, scoped, tag = 'input window, operand 1, single buffered']
    #allocation3 [shape = 's32[1]{0}', space=sflag, size = 0x4, scoped, tag = 'scoped memory for roberta_mlp_head.1']
    #allocation4 [shape = 'u8[131072]{0}', space=vmem, size = 0x20000, scoped, tag = 'input window, operand 3, single buffered']
    #allocation5 [shape = 's32[1]{0}', space=sflag, size = 0x4, scoped, tag = 'scoped memory for roberta_mlp_head.1']
    %11 = vsyncpa [#allocation3], 0
    %12 = vsyncpa [#allocation5], 0
    // Predicated region
    $region2: #{roberta_mlp_head.1} parent=1 // pred_check
      _
    $region3: #{roberta_mlp_head.1} parent=1 // pred_check_branch
      %14 = sbr.rel (0) target = $region5
    $region4: #{roberta_mlp_head.1} parent=1 // pred_region
      _
    $region5: #{roberta_mlp_head.1} parent=1 // pred_fallthru
      _
    // Predicated region
    $region6: #{roberta_mlp_head.1} parent=1 // pred_check
      _
    $region7: #{roberta_mlp_head.1} parent=1 // pred_check_branch
      %16 = sbr.rel (0) target = $region9
    $region8: #{roberta_mlp_head.1} parent=1 // pred_region
      %s18 = ssub.s32 8192, 8192
      %19 = vsyncadd [#allocation3], %s18
      %s20 = sshll.u32 [#allocation2], 4
      %s21 = int_to_ptr.vmem [resolvable:$true] %s20
      %26 = dma.hbm_to_vmem [thread:$0]  %s1, 8192, %s21, [#allocation3], 256, 256, 16
    $region9: #{roberta_mlp_head.1} parent=1 // pred_fallthru
      _
    // Predicated region
    $region10: #{roberta_mlp_head.1} parent=1 // pred_check
      _
    $region11: #{roberta_mlp_head.1} parent=1 // pred_check_branch
      %28 = sbr.rel (0) target = $region13
    $region12: #{roberta_mlp_head.1} parent=1 // pred_region
      _
    $region13: #{roberta_mlp_head.1} parent=1 // pred_fallthru
      _
    // Predicated region
    $region14: #{roberta_mlp_head.1} parent=1 // pred_check
      _
    $region15: #{roberta_mlp_head.1} parent=1 // pred_check_branch
      %30 = sbr.rel (0) target = $region17
    $region16: #{roberta_mlp_head.1} parent=1 // pred_region
      %s32 = ssub.s32 4096, 4096
      %33 = vsyncadd [#allocation5], %s32
      %s34 = sshll.u32 [#allocation4], 4
      %s35 = int_to_ptr.vmem [resolvable:$true] %s34
      %40 = dma.hbm_to_vmem [thread:$0]  %s3, 4096, %s35, [#allocation5], 64, 64, 4
    $region17: #{roberta_mlp_head.1} parent=1 // pred_fallthru
      _
    // Predicated region
    $region18: #{roberta_mlp_head.1} parent=1 // pred_check
      _
    $region19: #{roberta_mlp_head.1} parent=1 // pred_check_branch
      %42 = sbr.rel (0) target = $region21
    $region20: #{roberta_mlp_head.1} parent=1 // pred_region
      _
    $region21: #{roberta_mlp_head.1} parent=1 // pred_fallthru
      _
    // Predicated region
    $region22: #{roberta_mlp_head.1} parent=1 // pred_check
      _
    $region23: #{roberta_mlp_head.1} parent=1 // pred_check_branch
      %44 = sbr.rel (0) target = $region25
    $region24: #{roberta_mlp_head.1} parent=1 // pred_region
      _
    $region25: #{roberta_mlp_head.1} parent=1 // pred_fallthru
      _
    // Predicated region
    $region26: #{roberta_mlp_head.1} parent=1 // pred_check
      _
    $region27: #{roberta_mlp_head.1} parent=1 // pred_check_branch
      %46 = sbr.rel (0) target = $region29
    $region28: #{roberta_mlp_head.1} parent=1 // pred_region
      %47 = dma.done [#allocation3], 8192
    $region29: #{roberta_mlp_head.1} parent=1 // pred_fallthru
      _
    // Predicated region
    $region30: #{roberta_mlp_head.1} parent=1 // pred_check
      _
    $region31: #{roberta_mlp_head.1} parent=1 // pred_check_branch
      %49 = sbr.rel (0) target = $region33
    $region32: #{roberta_mlp_head.1} parent=1 // pred_region
      %50 = dma.done [#allocation5], 4096
    $region33: #{roberta_mlp_head.1} parent=1 // pred_fallthru
      _
    %v52 = vld [vmem:[%s0] sm:$0xff]
    %v53 = vld [vmem:[%s0 + $0x8] sm:$0xff]
    %v54 = vpack.c.bf16 %v52, %v52
    %v55 = vpack.c.bf16 %v53, %v53
    %v56 = vld [vmem:[#allocation2] sm:$0xff]
    %v57 = vld [vmem:[#allocation2 + $0x8] sm:$0xff]
    %v58 = vld [vmem:[#allocation2 + $0x10] sm:$0xff]
    %v59 = vld [vmem:[#allocation2 + $0x18] sm:$0xff]
    %v60 = vld [vmem:[#allocation2 + $0x20] sm:$0xff]
    %v61 = vld [vmem:[#allocation2 + $0x28] sm:$0xff]
    %v62 = vld [vmem:[#allocation2 + $0x30] sm:$0xff]
    %v63 = vld [vmem:[#allocation2 + $0x38] sm:$0xff]
    %v64 = vld [vmem:[#allocation2 + $0x40] sm:$0xff]
    %v65 = vld [vmem:[#allocation2 + $0x48] sm:$0xff]
    %v66 = vld [vmem:[#allocation2 + $0x50] sm:$0xff]
    %v67 = vld [vmem:[#allocation2 + $0x58] sm:$0xff]
    %v68 = vld [vmem:[#allocation2 + $0x60] sm:$0xff]
    %v69 = vld [vmem:[#allocation2 + $0x68] sm:$0xff]
    %v70 = vld [vmem:[#allocation2 + $0x70] sm:$0xff]
    %v71 = vld [vmem:[#allocation2 + $0x78] sm:$0xff]
    %v72 = vld [vmem:[#allocation2 + $0x80] sm:$0xff]
    %v73 = vld [vmem:[#allocation2 + $0x88] sm:$0xff]
    %v74 = vld [vmem:[#allocation2 + $0x90] sm:$0xff]
    %v75 = vld [vmem:[#allocation2 + $0x98] sm:$0xff]
    %v76 = vld [vmem:[#allocation2 + $0xa0] sm:$0xff]
    %v77 = vld [vmem:[#allocation2 + $0xa8] sm:$0xff]
    %v78 = vld [vmem:[#allocation2 + $0xb0] sm:$0xff]
    %v79 = vld [vmem:[#allocation2 + $0xb8] sm:$0xff]
    %v80 = vld [vmem:[#allocation2 + $0xc0] sm:$0xff]
    %v81 = vld [vmem:[#allocation2 + $0xc8] sm:$0xff]
    %v82 = vld [vmem:[#allocation2 + $0xd0] sm:$0xff]
    %v83 = vld [vmem:[#allocation2 + $0xd8] sm:$0xff]
    %v84 = vld [vmem:[#allocation2 + $0xe0] sm:$0xff]
    %v85 = vld [vmem:[#allocation2 + $0xe8] sm:$0xff]
    %v86 = vld [vmem:[#allocation2 + $0xf0] sm:$0xff]
    %v87 = vld [vmem:[#allocation2 + $0xf8] sm:$0xff]
    %v88 = vld [vmem:[#allocation2 + $0x100] sm:$0xff]
    %v89 = vld [vmem:[#allocation2 + $0x108] sm:$0xff]
    %v90 = vld [vmem:[#allocation2 + $0x110] sm:$0xff]
    %v91 = vld [vmem:[#allocation2 + $0x118] sm:$0xff]
    %v92 = vld [vmem:[#allocation2 + $0x120] sm:$0xff]
    %v93 = vld [vmem:[#allocation2 + $0x128] sm:$0xff]
    %v94 = vld [vmem:[#allocation2 + $0x130] sm:$0xff]
    %v95 = vld [vmem:[#allocation2 + $0x138] sm:$0xff]
    %v96 = vld [vmem:[#allocation2 + $0x140] sm:$0xff]
    %v97 = vld [vmem:[#allocation2 + $0x148] sm:$0xff]
    %v98 = vld [vmem:[#allocation2 + $0x150] sm:$0xff]
    %v99 = vld [vmem:[#allocation2 + $0x158] sm:$0xff]
    %v100 = vld [vmem:[#allocation2 + $0x160] sm:$0xff]
    %v101 = vld [vmem:[#allocation2 + $0x168] sm:$0xff]
    %v102 = vld [vmem:[#allocation2 + $0x170] sm:$0xff]
    %v103 = vld [vmem:[#allocation2 + $0x178] sm:$0xff]
    %v104 = vld [vmem:[#allocation2 + $0x180] sm:$0xff]
    %v105 = vld [vmem:[#allocation2 + $0x188] sm:$0xff]
    %v106 = vld [vmem:[#allocation2 + $0x190] sm:$0xff]
    %v107 = vld [vmem:[#allocation2 + $0x198] sm:$0xff]
    %v108 = vld [vmem:[#allocation2 + $0x1a0] sm:$0xff]
    %v109 = vld [vmem:[#allocation2 + $0x1a8] sm:$0xff]
    %v110 = vld [vmem:[#allocation2 + $0x1b0] sm:$0xff]
    %v111 = vld [vmem:[#allocation2 + $0x1b8] sm:$0xff]
    %v112 = vld [vmem:[#allocation2 + $0x1c0] sm:$0xff]
    %v113 = vld [vmem:[#allocation2 + $0x1c8] sm:$0xff]
    %v114 = vld [vmem:[#allocation2 + $0x1d0] sm:$0xff]
    %v115 = vld [vmem:[#allocation2 + $0x1d8] sm:$0xff]
    %v116 = vld [vmem:[#allocation2 + $0x1e0] sm:$0xff]
    %v117 = vld [vmem:[#allocation2 + $0x1e8] sm:$0xff]
    %v118 = vld [vmem:[#allocation2 + $0x1f0] sm:$0xff]
    %v119 = vld [vmem:[#allocation2 + $0x1f8] sm:$0xff]
    %v120 = vld [vmem:[%s2] sm:$0xf]
    %v122 = vlaneseq
    %v123 = vshrl.u32 %v122, 7
    %v124 = vsub.s32 0, %v123
    %v125 = vrot.slane %v120, %v124
    %v126 = vlaneseq
    %v127 = vshrl.u32 %v126, 7
    %v128 = vsub.s32 1, %v127
    %v129 = vrot.slane %v120, %v128
    %v130 = vlaneseq
    %v131 = vshrl.u32 %v130, 7
    %v132 = vsub.s32 2, %v131
    %v133 = vrot.slane %v120, %v132
    %v134 = vlaneseq
    %v135 = vshrl.u32 %v134, 7
    %v136 = vsub.s32 3, %v135
    %v137 = vrot.slane %v120, %v136
    %v206 = vunpack.c.l.b16 %v56
    %v207 = vunpack.c.h.b16 %v56
    %v208 = vunpack.c.l.b16 %v57
    %v209 = vunpack.c.h.b16 %v57
    %v210 = vunpack.c.l.b16 %v58
    %v211 = vunpack.c.h.b16 %v58
    %v212 = vunpack.c.l.b16 %v59
    %v213 = vunpack.c.h.b16 %v59
    %v214 = vunpack.c.l.b16 %v60
    %v215 = vunpack.c.h.b16 %v60
    %v216 = vunpack.c.l.b16 %v61
    %v217 = vunpack.c.h.b16 %v61
    %v218 = vunpack.c.l.b16 %v62
    %v219 = vunpack.c.h.b16 %v62
    %v220 = vunpack.c.l.b16 %v63
    %v221 = vunpack.c.h.b16 %v63
    %v222 = vunpack.c.l.b16 %v64
    %v223 = vunpack.c.h.b16 %v64
    %v224 = vunpack.c.l.b16 %v65
    %v225 = vunpack.c.h.b16 %v65
    %v226 = vunpack.c.l.b16 %v66
    %v227 = vunpack.c.h.b16 %v66
    %v228 = vunpack.c.l.b16 %v67
    %v229 = vunpack.c.h.b16 %v67
    %v230 = vunpack.c.l.b16 %v68
    %v231 = vunpack.c.h.b16 %v68
    %v232 = vunpack.c.l.b16 %v69
    %v233 = vunpack.c.h.b16 %v69
    %v234 = vunpack.c.l.b16 %v70
    %v235 = vunpack.c.h.b16 %v70
    %v236 = vunpack.c.l.b16 %v71
    %v237 = vunpack.c.h.b16 %v71
    %v238 = vunpack.c.l.b16 %v72
    %v239 = vunpack.c.h.b16 %v72
    %v240 = vunpack.c.l.b16 %v73
    %v241 = vunpack.c.h.b16 %v73
    %v242 = vunpack.c.l.b16 %v74
    %v243 = vunpack.c.h.b16 %v74
    %v244 = vunpack.c.l.b16 %v75
    %v245 = vunpack.c.h.b16 %v75
    %v246 = vunpack.c.l.b16 %v76
    %v247 = vunpack.c.h.b16 %v76
    %v248 = vunpack.c.l.b16 %v77
    %v249 = vunpack.c.h.b16 %v77
    %v250 = vunpack.c.l.b16 %v78
    %v251 = vunpack.c.h.b16 %v78
    %v252 = vunpack.c.l.b16 %v79
    %v253 = vunpack.c.h.b16 %v79
    %v254 = vunpack.c.l.b16 %v80
    %v255 = vunpack.c.h.b16 %v80
    %v256 = vunpack.c.l.b16 %v81
    %v257 = vunpack.c.h.b16 %v81
    %v258 = vunpack.c.l.b16 %v82
    %v259 = vunpack.c.h.b16 %v82
    %v260 = vunpack.c.l.b16 %v83
    %v261 = vunpack.c.h.b16 %v83
    %v262 = vunpack.c.l.b16 %v84
    %v263 = vunpack.c.h.b16 %v84
    %v264 = vunpack.c.l.b16 %v85
    %v265 = vunpack.c.h.b16 %v85
    %v266 = vunpack.c.l.b16 %v86
    %v267 = vunpack.c.h.b16 %v86
    %v268 = vunpack.c.l.b16 %v87
    %v269 = vunpack.c.h.b16 %v87
    %v270 = vunpack.c.l.b16 %v88
    %v271 = vunpack.c.h.b16 %v88
    %v272 = vunpack.c.l.b16 %v89
    %v273 = vunpack.c.h.b16 %v89
    %v274 = vunpack.c.l.b16 %v90
    %v275 = vunpack.c.h.b16 %v90
    %v276 = vunpack.c.l.b16 %v91
    %v277 = vunpack.c.h.b16 %v91
    %v278 = vunpack.c.l.b16 %v92
    %v279 = vunpack.c.h.b16 %v92
    %v280 = vunpack.c.l.b16 %v93
    %v281 = vunpack.c.h.b16 %v93
    %v282 = vunpack.c.l.b16 %v94
    %v283 = vunpack.c.h.b16 %v94
    %v284 = vunpack.c.l.b16 %v95
    %v285 = vunpack.c.h.b16 %v95
    %v286 = vunpack.c.l.b16 %v96
    %v287 = vunpack.c.h.b16 %v96
    %v288 = vunpack.c.l.b16 %v97
    %v289 = vunpack.c.h.b16 %v97
    %v290 = vunpack.c.l.b16 %v98
    %v291 = vunpack.c.h.b16 %v98
    %v292 = vunpack.c.l.b16 %v99
    %v293 = vunpack.c.h.b16 %v99
    %v294 = vunpack.c.l.b16 %v100
    %v295 = vunpack.c.h.b16 %v100
    %v296 = vunpack.c.l.b16 %v101
    %v297 = vunpack.c.h.b16 %v101
    %v298 = vunpack.c.l.b16 %v102
    %v299 = vunpack.c.h.b16 %v102
    %v300 = vunpack.c.l.b16 %v103
    %v301 = vunpack.c.h.b16 %v103
    %v302 = vunpack.c.l.b16 %v104
    %v303 = vunpack.c.h.b16 %v104
    %v304 = vunpack.c.l.b16 %v105
    %v305 = vunpack.c.h.b16 %v105
    %v306 = vunpack.c.l.b16 %v106
    %v307 = vunpack.c.h.b16 %v106
    %v308 = vunpack.c.l.b16 %v107
    %v309 = vunpack.c.h.b16 %v107
    %v310 = vunpack.c.l.b16 %v108
    %v311 = vunpack.c.h.b16 %v108
    %v312 = vunpack.c.l.b16 %v109
    %v313 = vunpack.c.h.b16 %v109
    %v314 = vunpack.c.l.b16 %v110
    %v315 = vunpack.c.h.b16 %v110
    %v316 = vunpack.c.l.b16 %v111
    %v317 = vunpack.c.h.b16 %v111
    %v318 = vunpack.c.l.b16 %v112
    %v319 = vunpack.c.h.b16 %v112
    %v320 = vunpack.c.l.b16 %v113
    %v321 = vunpack.c.h.b16 %v113
    %v322 = vunpack.c.l.b16 %v114
    %v323 = vunpack.c.h.b16 %v114
    %v324 = vunpack.c.l.b16 %v115
    %v325 = vunpack.c.h.b16 %v115
    %v326 = vunpack.c.l.b16 %v116
    %v327 = vunpack.c.h.b16 %v116
    %v328 = vunpack.c.l.b16 %v117
    %v329 = vunpack.c.h.b16 %v117
    %v330 = vunpack.c.l.b16 %v118
    %v331 = vunpack.c.h.b16 %v118
    %v332 = vunpack.c.l.b16 %v119
    %v333 = vunpack.c.h.b16 %v119
    %v334 = vpack.c.b16 %v210, %v206
    %v335 = vpack.c.b16 %v211, %v207
    %v336 = vpack.c.b16 %v212, %v208
    %v337 = vpack.c.b16 %v213, %v209
    %v338 = vpack.c.b16 %v218, %v214
    %v339 = vpack.c.b16 %v219, %v215
    %v340 = vpack.c.b16 %v220, %v216
    %v341 = vpack.c.b16 %v221, %v217
    %v342 = vpack.c.b16 %v226, %v222
    %v343 = vpack.c.b16 %v227, %v223
    %v344 = vpack.c.b16 %v228, %v224
    %v345 = vpack.c.b16 %v229, %v225
    %v346 = vpack.c.b16 %v234, %v230
    %v347 = vpack.c.b16 %v235, %v231
    %v348 = vpack.c.b16 %v236, %v232
    %v349 = vpack.c.b16 %v237, %v233
    %v350 = vpack.c.b16 %v242, %v238
    %v351 = vpack.c.b16 %v243, %v239
    %v352 = vpack.c.b16 %v244, %v240
    %v353 = vpack.c.b16 %v245, %v241
    %v354 = vpack.c.b16 %v250, %v246
    %v355 = vpack.c.b16 %v251, %v247
    %v356 = vpack.c.b16 %v252, %v248
    %v357 = vpack.c.b16 %v253, %v249
    %v358 = vpack.c.b16 %v258, %v254
    %v359 = vpack.c.b16 %v259, %v255
    %v360 = vpack.c.b16 %v260, %v256
    %v361 = vpack.c.b16 %v261, %v257
    %v362 = vpack.c.b16 %v266, %v262
    %v363 = vpack.c.b16 %v267, %v263
    %v364 = vpack.c.b16 %v268, %v264
    %v365 = vpack.c.b16 %v269, %v265
    %v366 = vpack.c.b16 %v274, %v270
    %v367 = vpack.c.b16 %v275, %v271
    %v368 = vpack.c.b16 %v276, %v272
    %v369 = vpack.c.b16 %v277, %v273
    %v370 = vpack.c.b16 %v282, %v278
    %v371 = vpack.c.b16 %v283, %v279
    %v372 = vpack.c.b16 %v284, %v280
    %v373 = vpack.c.b16 %v285, %v281
    %v374 = vpack.c.b16 %v290, %v286
    %v375 = vpack.c.b16 %v291, %v287
    %v376 = vpack.c.b16 %v292, %v288
    %v377 = vpack.c.b16 %v293, %v289
    %v378 = vpack.c.b16 %v298, %v294
    %v379 = vpack.c.b16 %v299, %v295
    %v380 = vpack.c.b16 %v300, %v296
    %v381 = vpack.c.b16 %v301, %v297
    %v382 = vpack.c.b16 %v306, %v302
    %v383 = vpack.c.b16 %v307, %v303
    %v384 = vpack.c.b16 %v308, %v304
    %v385 = vpack.c.b16 %v309, %v305
    %v386 = vpack.c.b16 %v314, %v310
    %v387 = vpack.c.b16 %v315, %v311
    %v388 = vpack.c.b16 %v316, %v312
    %v389 = vpack.c.b16 %v317, %v313
    %v390 = vpack.c.b16 %v322, %v318
    %v391 = vpack.c.b16 %v323, %v319
    %v392 = vpack.c.b16 %v324, %v320
    %v393 = vpack.c.b16 %v325, %v321
    %v394 = vpack.c.b16 %v330, %v326
    %v395 = vpack.c.b16 %v331, %v327
    %v396 = vpack.c.b16 %v332, %v328
    %v397 = vpack.c.b16 %v333, %v329
    %462 = vmatprep.subr.bf16.mxu0 %v363
    %463 = vmatpush1.bf16.msra.mxu0 %v362
    %464 = vmatprep.subr.bf16.mxu0 %v359
    %465 = vmatpush1.bf16.msra.mxu0 %v358
    %466 = vmatprep.subr.bf16.mxu0 %v355
    %467 = vmatpush1.bf16.msra.mxu0 %v354
    %468 = vmatprep.subr.bf16.mxu0 %v351
    %469 = vmatpush1.bf16.msra.mxu0 %v350
    %470 = vmatprep.subr.bf16.mxu0 %v347
    %471 = vmatpush1.bf16.msra.mxu0 %v346
    %472 = vmatprep.subr.bf16.mxu0 %v343
    %473 = vmatpush1.bf16.msra.mxu0 %v342
    %474 = vmatprep.subr.bf16.mxu0 %v339
    %475 = vmatpush1.bf16.msra.mxu0 %v338
    %476 = vmatprep.subr.bf16.mxu0 %v335
    %477 = vmatpush1.bf16.msra.mxu0 %v334
    %478 = vmatprep.subr.bf16.mxu0 %v395
    %479 = vmatpush2.bf16.msra.mxu0 %v394
    %480 = vmatprep.subr.bf16.mxu0 %v391
    %481 = vmatpush2.bf16.msra.mxu0 %v390
    %482 = vmatprep.subr.bf16.mxu0 %v387
    %483 = vmatpush2.bf16.msra.mxu0 %v386
    %484 = vmatprep.subr.bf16.mxu0 %v383
    %485 = vmatpush2.bf16.msra.mxu0 %v382
    %486 = vmatprep.subr.bf16.mxu0 %v379
    %487 = vmatpush2.bf16.msra.mxu0 %v378
    %488 = vmatprep.subr.bf16.mxu0 %v375
    %489 = vmatpush2.bf16.msra.mxu0 %v374
    %490 = vmatprep.subr.bf16.mxu0 %v371
    %491 = vmatpush2.bf16.msra.mxu0 %v370
    %492 = vmatprep.subr.bf16.mxu0 %v367
    %493 = vmatpush2.bf16.msra.mxu0 %v366
    %494 = vmatprep.mubr.bf16.mxu0 %v55
    %495 = vmatmul.mubr.bf16.gmra.mxu0 %v54
    %v496 = vpop.f32.mrf.mxu0
    %v497 = vadd.f32 %v125, %v496
    %v498 = vpop.f32.mrf.mxu0
    %v499 = vadd.f32 %v129, %v498
    %v500 = vpop.f32.mrf.mxu0
    %v501 = vpop.f32.mrf.mxu0
    %502 = vdwg.mxu0
    %503 = vmatprep.subr.bf16.mxu0 %v365
    %504 = vmatpush1.bf16.msra.mxu0 %v364
    %505 = vmatprep.subr.bf16.mxu0 %v361
    %506 = vmatpush1.bf16.msra.mxu0 %v360
    %507 = vmatprep.subr.bf16.mxu0 %v357
    %508 = vmatpush1.bf16.msra.mxu0 %v356
    %509 = vmatprep.subr.bf16.mxu0 %v353
    %510 = vmatpush1.bf16.msra.mxu0 %v352
    %511 = vmatprep.subr.bf16.mxu0 %v349
    %512 = vmatpush1.bf16.msra.mxu0 %v348
    %513 = vmatprep.subr.bf16.mxu0 %v345
    %514 = vmatpush1.bf16.msra.mxu0 %v344
    %515 = vmatprep.subr.bf16.mxu0 %v341
    %516 = vmatpush1.bf16.msra.mxu0 %v340
    %517 = vmatprep.subr.bf16.mxu0 %v337
    %518 = vmatpush1.bf16.msra.mxu0 %v336
    %519 = vmatprep.subr.bf16.mxu0 %v397
    %520 = vmatpush2.bf16.msra.mxu0 %v396
    %521 = vmatprep.subr.bf16.mxu0 %v393
    %522 = vmatpush2.bf16.msra.mxu0 %v392
    %523 = vmatprep.subr.bf16.mxu0 %v389
    %524 = vmatpush2.bf16.msra.mxu0 %v388
    %525 = vmatprep.subr.bf16.mxu0 %v385
    %526 = vmatpush2.bf16.msra.mxu0 %v384
    %527 = vmatprep.subr.bf16.mxu0 %v381
    %528 = vmatpush2.bf16.msra.mxu0 %v380
    %529 = vmatprep.subr.bf16.mxu0 %v377
    %530 = vmatpush2.bf16.msra.mxu0 %v376
    %531 = vmatprep.subr.bf16.mxu0 %v373
    %532 = vmatpush2.bf16.msra.mxu0 %v372
    %533 = vmatprep.subr.bf16.mxu0 %v369
    %534 = vmatpush2.bf16.msra.mxu0 %v368
    %535 = vmatprep.mubr.bf16.mxu0 %v55
    %536 = vmatmul.mubr.bf16.gmra.mxu0 %v54
    %v537 = vpop.f32.mrf.mxu0
    %v538 = vadd.f32 %v133, %v537
    %v539 = vpop.f32.mrf.mxu0
    %v540 = vadd.f32 %v137, %v539
    %v541 = vpop.f32.mrf.mxu0
    %v542 = vpop.f32.mrf.mxu0
    %543 = vdwg.mxu0
    %v544 = vmax.f32 %v497, 0.0
    %v545 = vmax.f32 %v499, 0.0
    %v546 = vmax.f32 %v538, 0.0
    %v547 = vmax.f32 %v540, 0.0
    %v548 = vpack.c.bf16 %v544, %v544
    %v549 = vpack.c.bf16 %v545, %v545
    %v550 = vpack.c.bf16 %v546, %v546
    %v551 = vpack.c.bf16 %v547, %v547
    %v552 = vld [vmem:[#allocation4] sm:$0xf]
    %v553 = vld [vmem:[#allocation4 + $0x4] sm:$0xf]
    %v554 = vld [vmem:[#allocation4 + $0x8] sm:$0xf]
    %v555 = vld [vmem:[#allocation4 + $0xc] sm:$0xf]
    %v556 = vld [vmem:[#allocation4 + $0x10] sm:$0xf]
    %v557 = vld [vmem:[#allocation4 + $0x14] sm:$0xf]
    %v558 = vld [vmem:[#allocation4 + $0x18] sm:$0xf]
    %v559 = vld [vmem:[#allocation4 + $0x1c] sm:$0xf]
    %v560 = vld [vmem:[#allocation4 + $0x20] sm:$0xf]
    %v561 = vld [vmem:[#allocation4 + $0x24] sm:$0xf]
    %v562 = vld [vmem:[#allocation4 + $0x28] sm:$0xf]
    %v563 = vld [vmem:[#allocation4 + $0x2c] sm:$0xf]
    %v564 = vld [vmem:[#allocation4 + $0x30] sm:$0xf]
    %v565 = vld [vmem:[#allocation4 + $0x34] sm:$0xf]
    %v566 = vld [vmem:[#allocation4 + $0x38] sm:$0xf]
    %v567 = vld [vmem:[#allocation4 + $0x3c] sm:$0xf]
    %v568 = vld [vmem:[#allocation4 + $0x40] sm:$0xf]
    %v569 = vld [vmem:[#allocation4 + $0x44] sm:$0xf]
    %v570 = vld [vmem:[#allocation4 + $0x48] sm:$0xf]
    %v571 = vld [vmem:[#allocation4 + $0x4c] sm:$0xf]
    %v572 = vld [vmem:[#allocation4 + $0x50] sm:$0xf]
    %v573 = vld [vmem:[#allocation4 + $0x54] sm:$0xf]
    %v574 = vld [vmem:[#allocation4 + $0x58] sm:$0xf]
    %v575 = vld [vmem:[#allocation4 + $0x5c] sm:$0xf]
    %v576 = vld [vmem:[#allocation4 + $0x60] sm:$0xf]
    %v577 = vld [vmem:[#allocation4 + $0x64] sm:$0xf]
    %v578 = vld [vmem:[#allocation4 + $0x68] sm:$0xf]
    %v579 = vld [vmem:[#allocation4 + $0x6c] sm:$0xf]
    %v580 = vld [vmem:[#allocation4 + $0x70] sm:$0xf]
    %v581 = vld [vmem:[#allocation4 + $0x74] sm:$0xf]
    %v582 = vld [vmem:[#allocation4 + $0x78] sm:$0xf]
    %v583 = vld [vmem:[#allocation4 + $0x7c] sm:$0xf]
    %v584 = vld [vmem:[#allocation4 + $0x80] sm:$0xf]
    %v585 = vld [vmem:[#allocation4 + $0x84] sm:$0xf]
    %v586 = vld [vmem:[#allocation4 + $0x88] sm:$0xf]
    %v587 = vld [vmem:[#allocation4 + $0x8c] sm:$0xf]
    %v588 = vld [vmem:[#allocation4 + $0x90] sm:$0xf]
    %v589 = vld [vmem:[#allocation4 + $0x94] sm:$0xf]
    %v590 = vld [vmem:[#allocation4 + $0x98] sm:$0xf]
    %v591 = vld [vmem:[#allocation4 + $0x9c] sm:$0xf]
    %v592 = vld [vmem:[#allocation4 + $0xa0] sm:$0xf]
    %v593 = vld [vmem:[#allocation4 + $0xa4] sm:$0xf]
    %v594 = vld [vmem:[#allocation4 + $0xa8] sm:$0xf]
    %v595 = vld [vmem:[#allocation4 + $0xac] sm:$0xf]
    %v596 = vld [vmem:[#allocation4 + $0xb0] sm:$0xf]
    %v597 = vld [vmem:[#allocation4 + $0xb4] sm:$0xf]
    %v598 = vld [vmem:[#allocation4 + $0xb8] sm:$0xf]
    %v599 = vld [vmem:[#allocation4 + $0xbc] sm:$0xf]
    %v600 = vld [vmem:[#allocation4 + $0xc0] sm:$0xf]
    %v601 = vld [vmem:[#allocation4 + $0xc4] sm:$0xf]
    %v602 = vld [vmem:[#allocation4 + $0xc8] sm:$0xf]
    %v603 = vld [vmem:[#allocation4 + $0xcc] sm:$0xf]
    %v604 = vld [vmem:[#allocation4 + $0xd0] sm:$0xf]
    %v605 = vld [vmem:[#allocation4 + $0xd4] sm:$0xf]
    %v606 = vld [vmem:[#allocation4 + $0xd8] sm:$0xf]
    %v607 = vld [vmem:[#allocation4 + $0xdc] sm:$0xf]
    %v608 = vld [vmem:[#allocation4 + $0xe0] sm:$0xf]
    %v609 = vld [vmem:[#allocation4 + $0xe4] sm:$0xf]
    %v610 = vld [vmem:[#allocation4 + $0xe8] sm:$0xf]
    %v611 = vld [vmem:[#allocation4 + $0xec] sm:$0xf]
    %v612 = vld [vmem:[#allocation4 + $0xf0] sm:$0xf]
    %v613 = vld [vmem:[#allocation4 + $0xf4] sm:$0xf]
    %v614 = vld [vmem:[#allocation4 + $0xf8] sm:$0xf]
    %v615 = vld [vmem:[#allocation4 + $0xfc] sm:$0xf]
    %v616 = vld [vmem:[%s4] sm:$0x1]
    %v618 = vlaneseq
    %v619 = vshrl.u32 %v618, 7
    %v620 = vsub.s32 0, %v619
    %v621 = vrot.slane %v616, %v620
    %v687 = vunpack.c.l.b16 %v552
    %v688 = vunpack.c.l.b16 %v553
    %v689 = vunpack.c.l.b16 %v554
    %v690 = vunpack.c.l.b16 %v555
    %v691 = vunpack.c.l.b16 %v556
    %v692 = vunpack.c.l.b16 %v557
    %v693 = vunpack.c.l.b16 %v558
    %v694 = vunpack.c.l.b16 %v559
    %v695 = vunpack.c.l.b16 %v560
    %v696 = vunpack.c.l.b16 %v561
    %v697 = vunpack.c.l.b16 %v562
    %v698 = vunpack.c.l.b16 %v563
    %v699 = vunpack.c.l.b16 %v564
    %v700 = vunpack.c.l.b16 %v565
    %v701 = vunpack.c.l.b16 %v566
    %v702 = vunpack.c.l.b16 %v567
    %v703 = vunpack.c.l.b16 %v568
    %v704 = vunpack.c.l.b16 %v569
    %v705 = vunpack.c.l.b16 %v570
    %v706 = vunpack.c.l.b16 %v571
    %v707 = vunpack.c.l.b16 %v572
    %v708 = vunpack.c.l.b16 %v573
    %v709 = vunpack.c.l.b16 %v574
    %v710 = vunpack.c.l.b16 %v575
    %v711 = vunpack.c.l.b16 %v576
    %v712 = vunpack.c.l.b16 %v577
    %v713 = vunpack.c.l.b16 %v578
    %v714 = vunpack.c.l.b16 %v579
    %v715 = vunpack.c.l.b16 %v580
    %v716 = vunpack.c.l.b16 %v581
    %v717 = vunpack.c.l.b16 %v582
    %v718 = vunpack.c.l.b16 %v583
    %v719 = vunpack.c.l.b16 %v584
    %v720 = vunpack.c.l.b16 %v585
    %v721 = vunpack.c.l.b16 %v586
    %v722 = vunpack.c.l.b16 %v587
    %v723 = vunpack.c.l.b16 %v588
    %v724 = vunpack.c.l.b16 %v589
    %v725 = vunpack.c.l.b16 %v590
    %v726 = vunpack.c.l.b16 %v591
    %v727 = vunpack.c.l.b16 %v592
    %v728 = vunpack.c.l.b16 %v593
    %v729 = vunpack.c.l.b16 %v594
    %v730 = vunpack.c.l.b16 %v595
    %v731 = vunpack.c.l.b16 %v596
    %v732 = vunpack.c.l.b16 %v597
    %v733 = vunpack.c.l.b16 %v598
    %v734 = vunpack.c.l.b16 %v599
    %v735 = vunpack.c.l.b16 %v600
    %v736 = vunpack.c.l.b16 %v601
    %v737 = vunpack.c.l.b16 %v602
    %v738 = vunpack.c.l.b16 %v603
    %v739 = vunpack.c.l.b16 %v604
    %v740 = vunpack.c.l.b16 %v605
    %v741 = vunpack.c.l.b16 %v606
    %v742 = vunpack.c.l.b16 %v607
    %v743 = vunpack.c.l.b16 %v608
    %v744 = vunpack.c.l.b16 %v609
    %v745 = vunpack.c.l.b16 %v610
    %v746 = vunpack.c.l.b16 %v611
    %v747 = vunpack.c.l.b16 %v612
    %v748 = vunpack.c.l.b16 %v613
    %v749 = vunpack.c.l.b16 %v614
    %v750 = vunpack.c.l.b16 %v615
    %v751 = vpack.c.b16 %v688, %v687
    %v752 = vpack.c.b16 %v690, %v689
    %v753 = vpack.c.b16 %v692, %v691
    %v754 = vpack.c.b16 %v694, %v693
    %v755 = vpack.c.b16 %v696, %v695
    %v756 = vpack.c.b16 %v698, %v697
    %v757 = vpack.c.b16 %v700, %v699
    %v758 = vpack.c.b16 %v702, %v701
    %v759 = vpack.c.b16 %v704, %v703
    %v760 = vpack.c.b16 %v706, %v705
    %v761 = vpack.c.b16 %v708, %v707
    %v762 = vpack.c.b16 %v710, %v709
    %v763 = vpack.c.b16 %v712, %v711
    %v764 = vpack.c.b16 %v714, %v713
    %v765 = vpack.c.b16 %v716, %v715
    %v766 = vpack.c.b16 %v718, %v717
    %v767 = vpack.c.b16 %v720, %v719
    %v768 = vpack.c.b16 %v722, %v721
    %v769 = vpack.c.b16 %v724, %v723
    %v770 = vpack.c.b16 %v726, %v725
    %v771 = vpack.c.b16 %v728, %v727
    %v772 = vpack.c.b16 %v730, %v729
    %v773 = vpack.c.b16 %v732, %v731
    %v774 = vpack.c.b16 %v734, %v733
    %v775 = vpack.c.b16 %v736, %v735
    %v776 = vpack.c.b16 %v738, %v737
    %v777 = vpack.c.b16 %v740, %v739
    %v778 = vpack.c.b16 %v742, %v741
    %v779 = vpack.c.b16 %v744, %v743
    %v780 = vpack.c.b16 %v746, %v745
    %v781 = vpack.c.b16 %v748, %v747
    %v782 = vpack.c.b16 %v750, %v749
    %815 = vmatprep.subr.bf16.mxu0 0
    %816 = vmatpush1.bf16.msra.mxu0 %v758
    %817 = vmatprep.subr.bf16.mxu0 0
    %818 = vmatpush1.bf16.msra.mxu0 %v757
    %819 = vmatprep.subr.bf16.mxu0 0
    %820 = vmatpush1.bf16.msra.mxu0 %v756
    %821 = vmatprep.subr.bf16.mxu0 0
    %822 = vmatpush1.bf16.msra.mxu0 %v755
    %823 = vmatprep.subr.bf16.mxu0 0
    %824 = vmatpush1.bf16.msra.mxu0 %v754
    %825 = vmatprep.subr.bf16.mxu0 0
    %826 = vmatpush1.bf16.msra.mxu0 %v753
    %827 = vmatprep.subr.bf16.mxu0 0
    %828 = vmatpush1.bf16.msra.mxu0 %v752
    %829 = vmatprep.subr.bf16.mxu0 0
    %830 = vmatpush1.bf16.msra.mxu0 %v751
    %831 = vmatprep.subr.bf16.mxu0 0
    %832 = vmatpush2.bf16.msra.mxu0 %v766
    %833 = vmatprep.subr.bf16.mxu0 0
    %834 = vmatpush2.bf16.msra.mxu0 %v765
    %835 = vmatprep.subr.bf16.mxu0 0
    %836 = vmatpush2.bf16.msra.mxu0 %v764
    %837 = vmatprep.subr.bf16.mxu0 0
    %838 = vmatpush2.bf16.msra.mxu0 %v763
    %839 = vmatprep.subr.bf16.mxu0 0
    %840 = vmatpush2.bf16.msra.mxu0 %v762
    %841 = vmatprep.subr.bf16.mxu0 0
    %842 = vmatpush2.bf16.msra.mxu0 %v761
    %843 = vmatprep.subr.bf16.mxu0 0
    %844 = vmatpush2.bf16.msra.mxu0 %v760
    %845 = vmatprep.subr.bf16.mxu0 0
    %846 = vmatpush2.bf16.msra.mxu0 %v759
    %847 = vmatprep.mubr.bf16.mxu0 %v549
    %848 = vmatmul.mubr.bf16.gmra.mxu0 %v548
    %v849 = vpop.f32.mrf.mxu0
    %v850 = vadd.f32 %v621, %v849
    %v851 = vpop.f32.mrf.mxu0
    %v852 = vpop.f32.mrf.mxu0
    %v853 = vpop.f32.mrf.mxu0
    %854 = vdwg.mxu0
    %855 = vmatprep.subr.bf16.mxu0 0
    %856 = vmatpush1.bf16.msra.mxu0 %v774
    %857 = vmatprep.subr.bf16.mxu0 0
    %858 = vmatpush1.bf16.msra.mxu0 %v773
    %859 = vmatprep.subr.bf16.mxu0 0
    %860 = vmatpush1.bf16.msra.mxu0 %v772
    %861 = vmatprep.subr.bf16.mxu0 0
    %862 = vmatpush1.bf16.msra.mxu0 %v771
    %863 = vmatprep.subr.bf16.mxu0 0
    %864 = vmatpush1.bf16.msra.mxu0 %v770
    %865 = vmatprep.subr.bf16.mxu0 0
    %866 = vmatpush1.bf16.msra.mxu0 %v769
    %867 = vmatprep.subr.bf16.mxu0 0
    %868 = vmatpush1.bf16.msra.mxu0 %v768
    %869 = vmatprep.subr.bf16.mxu0 0
    %870 = vmatpush1.bf16.msra.mxu0 %v767
    %871 = vmatprep.subr.bf16.mxu0 0
    %872 = vmatpush2.bf16.msra.mxu0 %v782
    %873 = vmatprep.subr.bf16.mxu0 0
    %874 = vmatpush2.bf16.msra.mxu0 %v781
    %875 = vmatprep.subr.bf16.mxu0 0
    %876 = vmatpush2.bf16.msra.mxu0 %v780
    %877 = vmatprep.subr.bf16.mxu0 0
    %878 = vmatpush2.bf16.msra.mxu0 %v779
    %879 = vmatprep.subr.bf16.mxu0 0
    %880 = vmatpush2.bf16.msra.mxu0 %v778
    %881 = vmatprep.subr.bf16.mxu0 0
    %882 = vmatpush2.bf16.msra.mxu0 %v777
    %883 = vmatprep.subr.bf16.mxu0 0
    %884 = vmatpush2.bf16.msra.mxu0 %v776
    %885 = vmatprep.subr.bf16.mxu0 0
    %886 = vmatpush2.bf16.msra.mxu0 %v775
    %887 = vmatprep.mubr.bf16.mxu0 %v551
    %888 = vmatmul.mubr.bf16.gmra.mxu0 %v550
    %v889 = vpop.f32.mrf.mxu0
    %v890 = vadd.f32 %v850, %v889
    %v891 = vpop.f32.mrf.mxu0
    %v892 = vpop.f32.mrf.mxu0
    %v893 = vpop.f32.mrf.mxu0
    %894 = vdwg.mxu0
    %895 = vmax.xlane.f32.xlu0 %v890
    %v896 = vpop.xlane.xlu0 %895
    %v897 = vsub.f32 %v890, %v896
    %v898 = vmul.f32 %v897, 1.442695
    %v899 = vpow.pop %v898
    %900 = vadd.xlane.f32.xlu0 %v899
    %v901 = vpop.xlane.xlu0 %900
    %v902 = vlog2.pop %v901
    %v903 = vmul.f32 %v902, 0.6931472
    %v904 = vadd.f32 %v896, %v903
    %v905 = vlaneseq
    %v906 = vand.u32 %v905, 127
    %v907 = vld [vmem:[%s5] sm:$0xff]
    %908 = vset.pattern.permute.xlu0 0
    %909 = vperm.xlu0 %908, %v907
    %v910 = vpop.permute.xlu0 %909
    %vm911 = vcmp.eq.s32.totalorder %v906, %v910
    %v912 = vsel %vm911, %v890, 0.0
    %913 = vadd.xlane.f32.xlu0 %v912
    %v914 = vpop.xlane.xlu0 %913
    %v915 = vsub.f32 %v904, %v914
    %vm916 = vcmp.eq.s32.totalorder %v906, 127
    %v917 = vsel %vm916, %v915, %v890
    %918 = vst [vmem:[%s6] sm:$0xff] %v917
    // Predicated region
    $region34: #{roberta_mlp_head.1} parent=1 // pred_check
      _
    $region35: #{roberta_mlp_head.1} parent=1 // pred_check_branch
      %920 = sbr.rel (0) target = $region37
    $region36: #{roberta_mlp_head.1} parent=1 // pred_region
      _
    $region37: #{roberta_mlp_head.1} parent=1 // pred_fallthru
      _
    // Predicated region
    $region38: #{roberta_mlp_head.1} parent=1 // pred_check
      _
    $region39: #{roberta_mlp_head.1} parent=1 // pred_check_branch
      %922 = sbr.rel (0) target = $region41
    $region40: #{roberta_mlp_head.1} parent=1 // pred_region
      _
    $region41: #{roberta_mlp_head.1} parent=1 // pred_fallthru
      _
    %923 = vsyncpa [#allocation3], 1
    %924 = vsyncpa [#allocation5], 1

</llo_original>
